<compile_context>
chip_gen: v7x
topology: tpu7x:2x2x1
jax: 0.10.0
libtpu: 0.0.40
codegen_flags: <defaults>
</compile_context>

<pallas_src>
import functools

import jax
import jax.numpy as jnp
from jax import lax
from jax.experimental import pallas as pl
from jax.experimental.pallas import tpu as pltpu

_LANE = 128
_SUBLANE = 8
# VMEM budget for the two double-buffered (N, TK) feature tiles.  Kept well
# under the 32 MiB scoped default and v7x's 64 MiB physical VMEM so the
# accumulator + resident target Gram still fit with headroom.
_TILE_BUDGET_BYTES = 16 * 1024 * 1024


def _round_up(x, m):
    return (x + m - 1) // m * m


def _choose_tk(n_pad, m_lanes, itemsize):
    """Largest lane-aligned K tile whose double buffer fits the tile budget."""
    max_tk = _TILE_BUDGET_BYTES // (2 * n_pad * itemsize)
    max_tk = max(_LANE, (max_tk // _LANE) * _LANE)
    return min(m_lanes, max_tk)


def _prepare_features(x):
    """NCHW -> zero-padded (n_pad, m_pad) features + tiling metadata."""
    b, c, h, w = x.shape
    n, m = b * c, h * w
    f = x.reshape(n, m)
    n_pad = _round_up(n, _SUBLANE)
    m_lanes = _round_up(m, _LANE)
    tk = _choose_tk(n_pad, m_lanes, jnp.dtype(x.dtype).itemsize)
    m_pad = _round_up(m_lanes, tk)
    if (n_pad, m_pad) != (n, m):
        # Zero padding is exact: padded rows/cols contribute 0 to F @ F.T.
        f = jnp.pad(f, ((0, n_pad - n), (0, m_pad - m)))
    return f, n, n_pad, m_pad, tk, float(n * m)


def _compiler_params(n_pad, tk, itemsize, n_resident_grams):
    vmem_needed = (
        2 * n_pad * tk * itemsize               # double-buffered feature tile
        + n_resident_grams * n_pad * n_pad * 4  # accumulator / target / output
        + (1 << 20)                             # slack
    )
    vmem_limit = max(32 * 1024 * 1024, min(int(vmem_needed * 2), 56 * 1024 * 1024))
    return pltpu.CompilerParams(
        dimension_semantics=("arbitrary",),     # K reduction axis
        vmem_limit_bytes=vmem_limit,
    )


# ----------------------------- kernels ------------------------------------ #

def _gram_kernel(f_ref, g_ref, acc_ref, *, inv_norm):
    """K-tiled G = (F @ F.T) * inv_norm with an f32 VMEM accumulator."""
    k = pl.program_id(0)

    @pl.when(k == 0)
    def _():
        acc_ref[...] = jnp.zeros_like(acc_ref)

    f = f_ref[...]
    # NT contraction on the MXU: contract last dim of both operands,
    # no explicit f.T materialization through the XLU.
    acc_ref[...] += lax.dot_general(
        f, f, dimension_numbers=(((1,), (1,)), ((), ())),
        preferred_element_type=jnp.float32)

    @pl.when(k == pl.num_programs(0) - 1)
    def _():
        g_ref[...] = acc_ref[...] * inv_norm


def _style_loss_kernel(f_ref, tgt_ref, loss_ref, acc_ref, *, inv_norm, inv_count):
    """loss = mean((gram(F) - target_gram)^2), epilogue only on last step."""
    k = pl.program_id(0)

    @pl.when(k == 0)
    def _():
        acc_ref[...] = jnp.zeros_like(acc_ref)

    f = f_ref[...]
    acc_ref[...] += lax.dot_general(
        f, f, dimension_numbers=(((1,), (1,)), ((), ())),
        preferred_element_type=jnp.float32)

    @pl.when(k == pl.num_programs(0) - 1)
    def _():
        d = acc_ref[...] * inv_norm - tgt_ref[...].astype(jnp.float32)
        # Padded rows/cols are zero in both Grams -> zero diff; dividing by the
        # real N*N count keeps the 'mean' reduction exact.
        loss_ref[...] = jnp.sum(d * d, axis=(0, 1), keepdims=True) * inv_count


# ----------------------------- wrappers ------------------------------------ #

def _gram_matrix_padded(x):
    f, n, n_pad, m_pad, tk, norm = _prepare_features(x)
    kt = m_pad // tk
    itemsize = jnp.dtype(f.dtype).itemsize
    kernel = functools.partial(_gram_kernel, inv_norm=1.0 / norm)
    g = pl.pallas_call(
        kernel,
        out_shape=jax.ShapeDtypeStruct((n_pad, n_pad), jnp.float32),
        grid_spec=pltpu.PrefetchScalarGridSpec(
            num_scalar_prefetch=0,
            grid=(kt,),
            in_specs=[pl.BlockSpec((n_pad, tk), lambda k: (0, k))],
            out_specs=pl.BlockSpec((n_pad, n_pad), lambda k: (0, 0)),
            scratch_shapes=[pltpu.VMEM((n_pad, n_pad), jnp.float32)]),
        compiler_params=_compiler_params(n_pad, tk, itemsize, 3),
        cost_estimate=pl.CostEstimate(
            flops=2 * n_pad * n_pad * m_pad,
            transcendentals=0,
            bytes_accessed=n_pad * m_pad * itemsize + n_pad * n_pad * 4),
    )(f)
    return g, n, n_pad


def gram_matrix(x):
    """Pallas Gram matrix of an NCHW tensor: (B*C, B*C) float32."""
    g, n, _ = _gram_matrix_padded(x)
    return g[:n, :n]


class StyleLoss:
    """JAX/Pallas port of the PyTorch styleLoss module."""

    def __init__(self, target):
        # target: NCHW style feature map; precompute its (padded) Gram matrix.
        g, n, n_pad = _gram_matrix_padded(target)
        self._n = n
        self._n_pad = n_pad
        self.target_padded = g          # (n_pad, n_pad), zero-padded
        self.target = g[:n, :n]         # exact Gram, PyTorch-equivalent

    def __call__(self, x):
        f, n, n_pad, m_pad, tk, norm = _prepare_features(x)
        assert (n, n_pad) == (self._n, self._n_pad), (
            "feature-map channel count mismatch with target")
        kt = m_pad // tk
        itemsize = jnp.dtype(f.dtype).itemsize
        kernel = functools.partial(
            _style_loss_kernel,
            inv_norm=1.0 / norm,
            inv_count=1.0 / float(n * n),
        )
        loss = pl.pallas_call(
            kernel,
            out_shape=jax.ShapeDtypeStruct((1, 1), jnp.float32),
            grid_spec=pltpu.PrefetchScalarGridSpec(
                num_scalar_prefetch=0,
                grid=(kt,),
                in_specs=[
                    pl.BlockSpec((n_pad, tk), lambda k: (0, k)),
                    # Target Gram stays resident in VMEM across the reduction.
                    pl.BlockSpec((n_pad, n_pad), lambda k: (0, 0)),
                ],
                out_specs=pl.BlockSpec((1, 1), lambda k: (0, 0)),
                scratch_shapes=[pltpu.VMEM((n_pad, n_pad), jnp.float32)]),
            compiler_params=_compiler_params(n_pad, tk, itemsize, 4),
            cost_estimate=pl.CostEstimate(
                flops=2 * n_pad * n_pad * m_pad,
                transcendentals=0,
                bytes_accessed=(n_pad * m_pad * itemsize
                                + 2 * n_pad * n_pad * 4)),
        )(f, self.target_padded)
        return loss.reshape(())  # scalar loss


# ------------------------------- main -------------------------------------- #

if __name__ == "__main__":
    key = jax.random.PRNGKey(0)
    k_tgt, k_x = jax.random.split(key)

    B, C, H, W = 2, 4, 16, 16  # small NCHW shapes
    target_feats = jax.random.normal(k_tgt, (B, C, H, W), dtype=jnp.float32)
    x = jax.random.normal(k_x, (B, C, H, W), dtype=jnp.float32)

    module = StyleLoss(target_feats)
    loss = module(x)
    jax.block_until_ready(loss)

    # Pure-JAX reference check.
    def ref_gram(t):
        b, c, h, w = t.shape
        f = t.reshape(b * c, h * w)
        return (f @ f.T) / (b * c * h * w)

    ref_loss = jnp.mean((ref_gram(x) - ref_gram(target_feats)) ** 2)
    assert jnp.allclose(loss, ref_loss, rtol=1e-5, atol=1e-5), (loss, ref_loss)

    print("KERNEL_OK")
</pallas_src>

<mosaic_0001>
module attributes {stable_mosaic.version = 11 : i64} {
  func.func @_gram_kernel(%arg0: i32, %arg1: memref<8x256xf32, #tpu.memory_space<vmem>>, %arg2: memref<8x8xf32, #tpu.memory_space<vmem>>, %arg3: memref<8x8xf32, #tpu.memory_space<vmem>>) attributes {dimension_semantics = [#tpu.dimension_semantics<arbitrary>], iteration_bounds = array<i64: 1>, scalar_prefetch = 0 : i64, scratch_operands = 1 : i64, tpu.core_type = #tpu.core_type<tc>, window_params = [{transform_indices = @transform_0, window_bounds = array<i64: 8, 256>}, {pipeline_mode = #tpu.pipeline_mode<synchronous>, transform_indices = @transform_1, window_bounds = array<i64: 8, 8>}]} {
    %c0_i32 = arith.constant 0 : i32
    %0 = arith.cmpi eq, %arg0, %c0_i32 : i32
    %1 = arith.extui %0 : i1 to i32
    %c0_i32_0 = arith.constant 0 : i32
    %2 = arith.cmpi ne, %1, %c0_i32_0 : i32
    scf.if %2 {
      %cst_8 = arith.constant 0.000000e+00 : f32
      %11 = vector.broadcast %cst_8 : f32 to vector<8x8xf32>
      %c0_9 = arith.constant 0 : index
      %c0_10 = arith.constant 0 : index
      %12 = vector.load %arg3[%c0_9, %c0_10] : memref<8x8xf32, #tpu.memory_space<vmem>>, vector<8x8xf32>
      tpu.vector_store %arg3[%c0_9, %c0_10], %11 {strides = array<i32>} : memref<8x8xf32, #tpu.memory_space<vmem>>, vector<8x8xf32>,
    } else {
    }
    %c0 = arith.constant 0 : index
    %c0_1 = arith.constant 0 : index
    %3 = vector.load %arg1[%c0, %c0_1] : memref<8x256xf32, #tpu.memory_space<vmem>>, vector<8x256xf32>
    %c0_2 = arith.constant 0 : index
    %c0_3 = arith.constant 0 : index
    %4 = vector.load %arg3[%c0_2, %c0_3] : memref<8x8xf32, #tpu.memory_space<vmem>>, vector<8x8xf32>
    %cst = arith.constant dense<0.000000e+00> : vector<8x8xf32>
    %5 = tpu.matmul %3, %3, %cst {dimension_numbers = #tpu.dot_dimension_numbers<[1], [1], [0], [0], [0, 0, 1, 0], [], []>} : vector<8x256xf32>, vector<8x256xf32>, vector<8x8xf32> -> vector<8x8xf32>
    %6 = arith.addf %4, %5 : vector<8x8xf32>
    %c0_4 = arith.constant 0 : index
    %c0_5 = arith.constant 0 : index
    %7 = vector.load %arg3[%c0_4, %c0_5] : memref<8x8xf32, #tpu.memory_space<vmem>>, vector<8x8xf32>
    tpu.vector_store %arg3[%c0_4, %c0_5], %6 {strides = array<i32>} : memref<8x8xf32, #tpu.memory_space<vmem>>, vector<8x8xf32>,
    %c0_i32_6 = arith.constant 0 : i32
    %8 = arith.cmpi eq, %arg0, %c0_i32_6 : i32
    %9 = arith.extui %8 : i1 to i32
    %c0_i32_7 = arith.constant 0 : i32
    %10 = arith.cmpi ne, %9, %c0_i32_7 : i32
    scf.if %10 {
      %c0_8 = arith.constant 0 : index
      %c0_9 = arith.constant 0 : index
      %11 = vector.load %arg3[%c0_8, %c0_9] : memref<8x8xf32, #tpu.memory_space<vmem>>, vector<8x8xf32>
      %cst_10 = arith.constant 4.8828125E-4 : f32
      %12 = vector.broadcast %cst_10 : f32 to vector<8x8xf32>
      %13 = arith.mulf %11, %12 : vector<8x8xf32>
      %c0_11 = arith.constant 0 : index
      %c0_12 = arith.constant 0 : index
      %14 = vector.load %arg2[%c0_11, %c0_12] : memref<8x8xf32, #tpu.memory_space<vmem>>, vector<8x8xf32>
      tpu.vector_store %arg2[%c0_11, %c0_12], %13 {strides = array<i32>} : memref<8x8xf32, #tpu.memory_space<vmem>>, vector<8x8xf32>,
    } else {
    }
    return
  }
  func.func @transform_0(%arg0: i32) -> (i32, i32) {
    %c0_i32 = arith.constant 0 : i32
    %c0_i32_0 = arith.constant 0 : i32
    return %c0_i32, %arg0 : i32, i32
  }
  func.func @transform_1(%arg0: i32) -> (i32, i32) {
    %c0_i32 = arith.constant 0 : i32
    %c0_i32_0 = arith.constant 0 : i32
    %c0_i32_1 = arith.constant 0 : i32
    return %c0_i32, %c0_i32_0 : i32, i32
  }
}

</mosaic_0001>

<llo_original>
// kernel: tpu_custom_call.1
$region0: #{tpu_custom_call.1}
  #allocation0 [shape = 'u32[]', space=smem, size = 0x4, offset = 0x4, fixed_abs, tag = 'smem constant byte address 0x4 - core index']
  #allocation1 [shape = 'u32[144,128]{1,0:T(1,128)}', space=vmem, size = 0x12000, scoped, tag = 'internal scratch']
  #allocation2 [shape = 'f32[8,8]{1,0:T(8,128)}', space=vmem, size = 0x1000, scoped, tag = 'scratch operand']
  %s0 = inlined_call_operand.hbm [shape: f32[8,256], index: 0, kind: input, shape index: {}]
  %s1 = inlined_call_operand.hbm [shape: f32[8,8], index: 1, kind: output, shape index: {}]
  %s2 = sld [smem:[#allocation0]]
  $region26: #{tpu_custom_call.1} parent=0
    _
  %s4 = ssub.s32 1, %s2
  %s5 = scalar_select 0, %s4, %s2
  $region1: #{tpu_custom_call.1} parent=0
    #allocation3 [shape = 'u8[8192]{0}', space=vmem, size = 0x2000, scoped, tag = 'input window, operand 0, single buffered']
    #allocation4 [shape = 's32[1]{0}', space=sflag, size = 0x4, scoped, tag = 'scoped memory for tpu_custom_call.1']
    #allocation5 [shape = 's32[1]{0}', space=sflag, size = 0x4, scoped, tag = 'scoped memory for tpu_custom_call.1']
    #allocation6 [shape = 'u8[4096]{0}', space=vmem, size = 0x1000, scoped, tag = 'output window, operand 0, single buffered']
    %6 = vsyncpa [#allocation4], 0
    %7 = vsyncpa [#allocation5], 0
    // Predicated region
    $region2: #{tpu_custom_call.1} parent=1 // pred_check
      _
    $region3: #{tpu_custom_call.1} parent=1 // pred_check_branch
      %9 = sbr.rel (0) target = $region5
    $region4: #{tpu_custom_call.1} parent=1 // pred_region
      %s11 = ssub.s32 256, 256
      %12 = vsyncadd [#allocation4], %s11
      %s14 = sshll.u32 [#allocation3], 4
      %s15 = int_to_ptr.vmem [resolvable:$true] %s14
      %17 = dma.hbm_to_vmem [thread:$0]  %s0, 256, %s15, [#allocation4]
    $region5: #{tpu_custom_call.1} parent=1 // pred_fallthru
      _
    // Predicated region
    $region6: #{tpu_custom_call.1} parent=1 // pred_check
      _
    $region7: #{tpu_custom_call.1} parent=1 // pred_check_branch
      %19 = sbr.rel (0) target = $region9
    $region8: #{tpu_custom_call.1} parent=1 // pred_region
      %20 = dma.done [#allocation4], 256
    $region9: #{tpu_custom_call.1} parent=1 // pred_fallthru
      _
    %p21 = scmp.eq.s32.totalorder 0, 0
    // Predicated region
    $region10: #{tpu_custom_call.1} parent=1 // pred_check
      %p22 = pneg %p21
    $region11: #{tpu_custom_call.1} parent=1 // pred_check_branch
      %24 = sbr.rel (%p22) target = $region13
    $region12: #{tpu_custom_call.1} parent=1 // pred_region
      %vm25 = vcmask 64512
      %26 = vst.msk [vmem:[#allocation2] sm:$0xff] %vm25, 0.0
    $region13: #{tpu_custom_call.1} parent=1 // pred_fallthru
      _
    %v27 = vld [vmem:[#allocation3] sm:$0xff]
    %v28 = vld [vmem:[#allocation3 + $0x8] sm:$0xff]
    %v29 = vld [vmem:[#allocation2] sm:$0xff]
    %30 = vmatprep.subr.mxu0 %v28
    %31 = vmatpush1.xpose.msra.mxu0 %v27
    %32 = vmatprep.subr.mxu0 0.0
    %33 = vmatpush1.xpose.msra.mxu0 0.0
    %34 = vmatprep.subr.mxu0 0.0
    %35 = vmatpush1.xpose.msra.mxu0 0.0
    %36 = vmatprep.subr.mxu0 0.0
    %37 = vmatpush1.xpose.msra.mxu0 0.0
    %38 = vmatprep.subr.mxu0 0.0
    %39 = vmatpush1.xpose.msra.mxu0 0.0
    %40 = vmatprep.subr.mxu0 0.0
    %41 = vmatpush1.xpose.msra.mxu0 0.0
    %42 = vmatprep.subr.mxu0 0.0
    %43 = vmatpush1.xpose.msra.mxu0 0.0
    %44 = vmatprep.subr.mxu0 0.0
    %45 = vmatpush1.xpose.msra.mxu0 0.0
    %46 = vmatprep.subr.mxu0 0.0
    %47 = vmatpush1.xpose.msra.mxu0 0.0
    %48 = vmatprep.subr.mxu0 0.0
    %49 = vmatpush1.xpose.msra.mxu0 0.0
    %50 = vmatprep.subr.mxu0 0.0
    %51 = vmatpush1.xpose.msra.mxu0 0.0
    %52 = vmatprep.subr.mxu0 0.0
    %53 = vmatpush1.xpose.msra.mxu0 0.0
    %54 = vmatprep.subr.mxu0 0.0
    %55 = vmatpush1.xpose.msra.mxu0 0.0
    %56 = vmatprep.subr.mxu0 0.0
    %57 = vmatpush1.xpose.msra.mxu0 0.0
    %58 = vmatprep.subr.mxu0 0.0
    %59 = vmatpush1.xpose.msra.mxu0 0.0
    %60 = vmatprep.subr.mxu0 0.0
    %61 = vmatpush1.xpose.msra.mxu0 0.0
    %62 = vmatprep.subr.mxu0 0.0
    %63 = vmatpush1.xpose.msra.mxu0 0.0
    %64 = vmatprep.subr.mxu0 0.0
    %65 = vmatpush1.xpose.msra.mxu0 0.0
    %66 = vmatprep.subr.mxu0 0.0
    %67 = vmatpush1.xpose.msra.mxu0 0.0
    %68 = vmatprep.subr.mxu0 0.0
    %69 = vmatpush1.xpose.msra.mxu0 0.0
    %70 = vmatprep.subr.mxu0 0.0
    %71 = vmatpush1.xpose.msra.mxu0 0.0
    %72 = vmatprep.subr.mxu0 0.0
    %73 = vmatpush1.xpose.msra.mxu0 0.0
    %74 = vmatprep.subr.mxu0 0.0
    %75 = vmatpush1.xpose.msra.mxu0 0.0
    %76 = vmatprep.subr.mxu0 0.0
    %77 = vmatpush1.xpose.msra.mxu0 0.0
    %78 = vmatprep.subr.mxu0 0.0
    %79 = vmatpush1.xpose.msra.mxu0 0.0
    %80 = vmatprep.subr.mxu0 0.0
    %81 = vmatpush1.xpose.msra.mxu0 0.0
    %82 = vmatprep.subr.mxu0 0.0
    %83 = vmatpush1.xpose.msra.mxu0 0.0
    %84 = vmatprep.subr.mxu0 0.0
    %85 = vmatpush1.xpose.msra.mxu0 0.0
    %86 = vmatprep.subr.mxu0 0.0
    %87 = vmatpush1.xpose.msra.mxu0 0.0
    %88 = vmatprep.subr.mxu0 0.0
    %89 = vmatpush1.xpose.msra.mxu0 0.0
    %90 = vmatprep.subr.mxu0 0.0
    %91 = vmatpush1.xpose.msra.mxu0 0.0
    %92 = vmatprep.subr.mxu0 0.0
    %93 = vmatpush1.xpose.msra.mxu0 0.0
    %94 = vmatprep.mubr.f32.mxu0 %v28
    %95 = vmatmul.mubr.f32.gmra.mrb[0].mxu0 %v27
    %v96 = vpop.f32.mrb[0].mxu0
    %v97 = vadd.f32 0.0, %v96
    %v98 = vpop.f32.mrb[0].mxu0
    %99 = vdwg.mxu0
    %v100 = vadd.f32 %v29, %v97
    %vm101 = vcmask 64512
    %102 = vst.msk [vmem:[#allocation2] sm:$0xff] %vm101, %v100
    // Predicated region
    $region14: #{tpu_custom_call.1} parent=1 // pred_check
      %p103 = pneg %p21
    $region15: #{tpu_custom_call.1} parent=1 // pred_check_branch
      %105 = sbr.rel (%p103) target = $region17
    $region16: #{tpu_custom_call.1} parent=1 // pred_region
      %v106 = vld [vmem:[#allocation2] sm:$0xff]
      %v107 = vmul.f32 %v106, 0.00048828125
      %108 = vst.msk [vmem:[#allocation6] sm:$0xff] %vm101, %v107
    $region17: #{tpu_custom_call.1} parent=1 // pred_fallthru
      _
    // Predicated region
    $region18: #{tpu_custom_call.1} parent=1 // pred_check
      _
    $region19: #{tpu_custom_call.1} parent=1 // pred_check_branch
      %110 = sbr.rel (0) target = $region21
    $region20: #{tpu_custom_call.1} parent=1 // pred_region
      %s112 = ssub.s32 128, 128
      %113 = vsyncadd [#allocation5], %s112
      %s115 = sshll.u32 [#allocation6], 4
      %s116 = int_to_ptr.vmem [resolvable:$true] %s115
      %118 = dma.vmem_to_hbm [thread:$0]  %s116, 128, %s1, [#allocation5]
    $region21: #{tpu_custom_call.1} parent=1 // pred_fallthru
      _
    // Predicated region
    $region22: #{tpu_custom_call.1} parent=1 // pred_check
      _
    $region23: #{tpu_custom_call.1} parent=1 // pred_check_branch
      %120 = sbr.rel (0) target = $region25
    $region24: #{tpu_custom_call.1} parent=1 // pred_region
      %121 = dma.done [#allocation5], 128
    $region25: #{tpu_custom_call.1} parent=1 // pred_fallthru
      _
    %122 = vsyncpa [#allocation4], 1
    %123 = vsyncpa [#allocation5], 1

</llo_original>
